<compile_context>
chip_gen: v6e
topology: v6e:2x2x1
jax: 0.10.0
libtpu: 0.0.40
codegen_flags: <defaults>
</compile_context>

<pallas_src>
import numpy as np
import jax
import jax.numpy as jnp
from jax.experimental import pallas as pl
from jax.experimental.pallas import tpu as pltpu

# ---- model configuration (small synthetic sizes, consistent with the module) ----
SPATIAL = 8            # "spatial" (EEG channels)
TEMPORAL = 64          # "temporal" (must be divisible by 32)
N_CLASSES = 10
BATCH = 2

F1 = 8
F2 = 16
D = 2
K1 = TEMPORAL // 2     # first temporal kernel length (32)
PAD1_L = K1 // 2       # 16
PAD1_R = K1 // 2 - 1   # 15
K2 = 16                # second temporal kernel length
PAD2_L, PAD2_R = 8, 7
TQ = TEMPORAL // 4     # width after first avg pool (16)
TO = TEMPORAL // 32    # width after second avg pool (2)
EPS = 1e-5

# packed-batch / fused-matmul layout constants
BT    = BATCH * TEMPORAL        # 128  stage-1 output width (batch packed on lanes)
PW2   = PAD2_L + TQ + PAD2_R    # 31   padded pooled width per batch
BPW2  = BATCH * PW2             # 62   stage-2 input width (batch packed)
WIDE2 = BPW2 - K2 + 1           # 47   stage-2 conv output width (batch packed)
KIN1  = K1 * SPATIAL            # 256  stage-1 im2col contraction depth
KIN2  = K2 * F2                 # 256  stage-2 im2col contraction depth


def _align8(n):
    return (n + 7) & ~7


# constant-slab row layout (all block starts 8-sublane aligned; lane width 256)
SLAB_COLS = max(KIN1, KIN2)                        # 256
R_W1F  = 0                                         # (F2, KIN1) fused stage-1 weight
R_W45  = _align8(R_W1F + F2)                       # (F2, KIN2) fused stage-2 weight
R_P4   = _align8(R_W45 + F2)                       # (BT, BPW2) pool4 + pad + re-pack
R_P8   = _align8(R_P4 + BT)                        # (WIDE2, TO*B) pool8 + de-pack
R_WFC  = _align8(R_P8 + WIDE2)                     # (N_CLASSES, TO*F2) FC weight
R_BIAS = _align8(R_WFC + N_CLASSES)                # col0=b1f, col1=b45, col2=bfc
SLAB_ROWS = _align8(R_BIAS + max(F2, N_CLASSES))   # 240


# --------------------------------------------------------------------------------
# Pallas kernel: full EEGNet forward for the whole (lane-packed) batch.
# Inputs: xcol  (KIN1, BT)        -- im2col'd, padded, batch-packed input
#         slab  (SLAB_ROWS, 256)  -- all folded constants in one DMA
# Output: logits (N_CLASSES, BATCH)
# --------------------------------------------------------------------------------
def _eegnet_kernel(xcol_ref, slab_ref, out_ref):
    f32 = jnp.float32

    def elu(h):
        # clamp the exp argument so the unselected branch can never overflow
        return jnp.where(h > 0, h, jnp.exp(jnp.minimum(h, 0.0)) - 1.0)

    # ---- stage 1: conv1 + BN1 + conv2 + conv3 + BN2 as ONE K=256 matmul ----
    w1f = slab_ref[R_W1F:R_W1F + F2, :]                                # (F2, KIN1)
    b1f = slab_ref[R_BIAS:R_BIAS + F2, 0:1]                            # (F2, 1)
    h = jnp.dot(w1f, xcol_ref[...], preferred_element_type=f32) + b1f  # (F2, BT)
    h = elu(h)

    # ---- stage 1 tail: avg-pool(1,4) + zero-pad(8,7) + batch re-pack, fused
    #      into one selection matmul.
    p4 = slab_ref[R_P4:R_P4 + BT, 0:BPW2]                              # (BT, BPW2)
    h = jnp.dot(h, p4, preferred_element_type=f32)                     # (F2, BPW2)

    # ---- stage 2: conv4 (grouped, K2 taps) + conv5 + BN3 as ONE K=256 matmul
    #      over an in-kernel im2col stack (single-vreg lane slices).
    xcol2 = jnp.concatenate([h[:, k:k + WIDE2] for k in range(K2)], axis=0)  # (KIN2, WIDE2)
    w45 = slab_ref[R_W45:R_W45 + F2, :]                                # (F2, KIN2)
    b45 = slab_ref[R_BIAS:R_BIAS + F2, 1:2]                            # (F2, 1)
    h = jnp.dot(w45, xcol2, preferred_element_type=f32) + b45          # (F2, WIDE2)
    h = elu(h)

    # ---- stage 3: avg-pool(1,8) + batch de-pack (one selection matmul), then
    #      the FC as ONE matmul against the (N_CLASSES, TO*F2) weight.
    p8c = slab_ref[R_P8:R_P8 + WIDE2, 0:TO * BATCH]                    # (WIDE2, TO*B)
    hp = jnp.dot(h, p8c, preferred_element_type=f32)                   # (F2, TO*B)
    hcat = jnp.concatenate([hp[:, o * BATCH:(o + 1) * BATCH] for o in range(TO)],
                           axis=0)                                     # (TO*F2, B)
    wfcc = slab_ref[R_WFC:R_WFC + N_CLASSES, 0:TO * F2]                # (N, TO*F2)
    bfc = slab_ref[R_BIAS:R_BIAS + N_CLASSES, 2:3]                     # (N, 1)
    out_ref[...] = jnp.dot(wfcc, hcat, preferred_element_type=f32) + bfc


# --------------------------------------------------------------------------------
# Wrapper: parameter folding, slab packing, im2col, pallas_call
# --------------------------------------------------------------------------------
def eegnet_forward(x, params):
    """x: (B, 1, SPATIAL, TEMPORAL) float32 (NCHW). Returns (B, N_CLASSES)."""
    (w1, b1, g1, be1, m1, v1,
     w2, b2,
     w3, b3, g2, be2, m2, v2,
     w4, b4,
     w5, b5, g3, be3, m3, v3,
     wfc, bfc) = params

    assert x.shape == (BATCH, 1, SPATIAL, TEMPORAL)
    f32 = jnp.float32

    def bn_scale_shift(g, be, m, v):
        s = g / jnp.sqrt(v + EPS)
        return s.astype(f32), (be - m * s).astype(f32)

    s1, t1 = bn_scale_shift(g1, be1, m1, v1)   # (F1,)
    s2, t2 = bn_scale_shift(g2, be2, m2, v2)   # (F2,)
    s3, t3 = bn_scale_shift(g3, be3, m3, v3)   # (F2,)

    w1k = w1[:, 0, 0, :].astype(f32)           # (F1, K1)
    w2k = w2[:, 0, :, 0].astype(f32)           # (F1, SPATIAL)
    w3k = w3[:, :, 0, 0].astype(f32)           # (F2, F1)
    w5k = w5[:, :, 0, 0].astype(f32)           # (F2, F2)

    # ---- stage-1 fold: conv1*BN1*conv2*conv3*BN2 -> one (F2, K1*SPATIAL) weight.
    # row of the im2col / column of the weight is indexed (k*SPATIAL + s).
    w1ks = (s1[:, None, None] * w1k[:, :, None] * w2k[:, None, :]).reshape(F1, KIN1)
    w1f = s2[:, None] * (w3k @ w1ks)                               # (F2, KIN1)
    c1 = (s1 * b1 + t1) * jnp.sum(w2k, axis=1) + b2                # (F1,)
    b1f = s2 * (w3k @ c1 + b3) + t2                                # (F2,)

    # fused "avg-pool(1,4) + zero-pad(8,7) + batch re-pack" selection matrix.
    p4 = np.zeros((BT, BPW2), np.float32)
    for b in range(BATCH):
        for t in range(TEMPORAL):
            p4[b * TEMPORAL + t, b * PW2 + PAD2_L + t // 4] = 0.25

    # ---- stage-2 fold: conv4 (grouped) + conv5 + BN3 -> one (F2, K2*F2) weight.
    cpg = F2 // F1                                                 # channels per group (2)
    w4d = jnp.zeros((F2, K2, F2), f32)
    for o in range(F2):
        g = o // cpg
        for i in range(cpg):
            w4d = w4d.at[o, :, g * cpg + i].set(w4[o, i, 0, :])
    w45 = s3[:, None] * (w5k @ w4d.reshape(F2, KIN2))              # (F2, KIN2)
    b45 = s3 * (w5k @ b4 + b5) + t3                                # (F2,)

    # ---- stage-3 folds: avg-pool(1,8) + batch de-pack selection, FC stacked
    # over the pooled-position axis (column order o*F2 + f matches the kernel's
    # hcat row order).
    p8c = np.zeros((WIDE2, TO * BATCH), np.float32)
    for o in range(TO):
        for b in range(BATCH):
            for j in range(8):
                p8c[b * PW2 + 8 * o + j, o * BATCH + b] = 0.125
    wfc3 = wfc.reshape(N_CLASSES, F2, TO).astype(f32)              # torch channel-major flatten
    wfc_cat = jnp.transpose(wfc3, (0, 2, 1)).reshape(N_CLASSES, TO * F2)

    # ---- pack ALL constants into a single f32 slab (one prologue DMA) ----
    slab = jnp.zeros((SLAB_ROWS, SLAB_COLS), f32)
    slab = slab.at[R_W1F:R_W1F + F2, :].set(w1f)
    slab = slab.at[R_W45:R_W45 + F2, :].set(w45)
    slab = slab.at[R_P4:R_P4 + BT, 0:BPW2].set(jnp.asarray(p4))
    slab = slab.at[R_P8:R_P8 + WIDE2, 0:TO * BATCH].set(jnp.asarray(p8c))
    slab = slab.at[R_WFC:R_WFC + N_CLASSES, 0:TO * F2].set(wfc_cat)
    slab = slab.at[R_BIAS:R_BIAS + F2, 0].set(b1f)
    slab = slab.at[R_BIAS:R_BIAS + F2, 1].set(b45)
    slab = slab.at[R_BIAS:R_BIAS + N_CLASSES, 2].set(bfc.astype(f32))

    # ---- input: pad temporal axis, im2col over the K1 taps, pack batch along
    # the lane axis -> (K1*SPATIAL, BATCH*TEMPORAL) = (256, 128), lane-dense.
    x_pad = jnp.pad(x[:, 0].astype(f32), ((0, 0), (0, 0), (PAD1_L, PAD1_R)))  # (B,S,T+K1-1)
    t_idx = jnp.arange(TEMPORAL)[:, None] + jnp.arange(K1)[None, :]           # (T, K1)
    xw = x_pad[:, :, t_idx]                                                   # (B, S, T, K1)
    xcol = jnp.transpose(xw, (3, 1, 0, 2)).reshape(KIN1, BT)                  # (256, 128)

    grid_spec = pltpu.PrefetchScalarGridSpec(
        num_scalar_prefetch=0,
        grid=(1,),     # whole batch packed on lanes -> a single grid step.
        in_specs=[pl.BlockSpec((KIN1, BT), lambda i: (0, 0)),
                  pl.BlockSpec((SLAB_ROWS, SLAB_COLS), lambda i: (0, 0))],
        out_specs=pl.BlockSpec((N_CLASSES, BATCH), lambda i: (0, 0)),
    )
    out = pl.pallas_call(
        _eegnet_kernel,
        out_shape=jax.ShapeDtypeStruct((N_CLASSES, BATCH), jnp.float32),
        grid_spec=grid_spec,
        # For larger batches: grid over lane-packed batch super-blocks and mark
        # that axis "parallel" (engages v7x's second TensorCore).
        compiler_params=pltpu.CompilerParams(dimension_semantics=("arbitrary",)),
    )(xcol, slab)
    return out.T                                                   # (B, N_CLASSES)


# --------------------------------------------------------------------------------
# Deterministic parameter init (shapes match the PyTorch module layers)
# --------------------------------------------------------------------------------
def init_params(key):
    ks = jax.random.split(key, 24)

    def rnd(k, shape, scale=0.1):
        return scale * jax.random.normal(k, shape, dtype=jnp.float32)

    w1 = rnd(ks[0], (F1, 1, 1, K1));            b1 = rnd(ks[1], (F1,))
    g1 = 1.0 + rnd(ks[2], (F1,));               be1 = rnd(ks[3], (F1,))
    m1 = rnd(ks[4], (F1,));                     v1 = 1.0 + 0.1 * jax.random.uniform(ks[5], (F1,))
    w2 = rnd(ks[6], (F1, 1, SPATIAL, 1));       b2 = rnd(ks[7], (F1,))
    w3 = rnd(ks[8], (F2, F1, 1, 1));            b3 = rnd(ks[9], (F2,))
    g2 = 1.0 + rnd(ks[10], (F2,));              be2 = rnd(ks[11], (F2,))
    m2 = rnd(ks[12], (F2,));                    v2 = 1.0 + 0.1 * jax.random.uniform(ks[13], (F2,))
    w4 = rnd(ks[14], (F2, F2 // F1, 1, K2));    b4 = rnd(ks[15], (F2,))
    w5 = rnd(ks[16], (F2, F2, 1, 1));           b5 = rnd(ks[17], (F2,))
    g3 = 1.0 + rnd(ks[18], (F2,));              be3 = rnd(ks[19], (F2,))
    m3 = rnd(ks[20], (F2,));                    v3 = 1.0 + 0.1 * jax.random.uniform(ks[21], (F2,))
    wfc = rnd(ks[22], (N_CLASSES, F2 * TO));    bfc = rnd(ks[23], (N_CLASSES,))
    return (w1, b1, g1, be1, m1, v1, w2, b2, w3, b3, g2, be2, m2, v2,
            w4, b4, w5, b5, g3, be3, m3, v3, wfc, bfc)


# --------------------------------------------------------------------------------
# Pure-JAX reference (mirrors the PyTorch module in eval mode)
# --------------------------------------------------------------------------------
def reference_forward(x, params):
    (w1, b1, g1, be1, m1, v1, w2, b2, w3, b3, g2, be2, m2, v2,
     w4, b4, w5, b5, g3, be3, m3, v3, wfc, bfc) = params

    def conv(h, w, b, groups=1):
        y = jax.lax.conv_general_dilated(
            h, w, window_strides=(1, 1), padding='VALID',
            dimension_numbers=('NCHW', 'OIHW', 'NCHW'),
            feature_group_count=groups,
            precision=jax.lax.Precision.HIGHEST)
        return y + b[None, :, None, None]

    def bn(h, g, be, m, v):
        return (h - m[None, :, None, None]) / jnp.sqrt(v[None, :, None, None] + EPS) \
               * g[None, :, None, None] + be[None, :, None, None]

    def elu(h):
        return jnp.where(h > 0, h, jnp.exp(jnp.minimum(h, 0.0)) - 1.0)

    def pool_w(h, k):
        b_, c, hh, w_ = h.shape
        return h.reshape(b_, c, hh, w_ // k, k).mean(-1)

    h = jnp.pad(x, ((0, 0), (0, 0), (0, 0), (PAD1_L, PAD1_R)))
    h = conv(h, w1, b1)
    h = bn(h, g1, be1, m1, v1)
    h = conv(h, w2, b2, groups=F1)
    h = conv(h, w3, b3)
    h = bn(h, g2, be2, m2, v2)
    h = elu(h)
    h = pool_w(h, 4)
    h = jnp.pad(h, ((0, 0), (0, 0), (0, 0), (PAD2_L, PAD2_R)))
    h = conv(h, w4, b4, groups=F1)
    h = conv(h, w5, b5)
    h = bn(h, g3, be3, m3, v3)
    h = elu(h)
    h = pool_w(h, 8)
    h = h.reshape(h.shape[0], -1)
    return h @ wfc.T + bfc


if __name__ == "__main__":
    key = jax.random.PRNGKey(0)
    kx, kp = jax.random.split(key)
    x = jax.random.normal(kx, (BATCH, 1, SPATIAL, TEMPORAL), dtype=jnp.float32)
    params = init_params(kp)

    out = eegnet_forward(x, params)
    out = jax.block_until_ready(out)

    ref = reference_forward(x, params)
    assert out.shape == (BATCH, N_CLASSES)
    assert bool(jnp.all(jnp.isfinite(out)))
    assert bool(jnp.allclose(out, ref, rtol=2e-2, atol=2e-2)), (out, ref)
    print("KERNEL_OK")
</pallas_src>

<mosaic_0001>
module attributes {stable_mosaic.version = 11 : i64} {
  func.func @_eegnet_kernel(%arg0: i32, %arg1: memref<256x128xf32, #tpu.memory_space<vmem>>, %arg2: memref<240x256xf32, #tpu.memory_space<vmem>>, %arg3: memref<10x2xf32, #tpu.memory_space<vmem>>) attributes {dimension_semantics = [#tpu.dimension_semantics<arbitrary>], iteration_bounds = array<i64: 1>, scalar_prefetch = 0 : i64, scratch_operands = 0 : i64, tpu.core_type = #tpu.core_type<tc>, window_params = [{pipeline_mode = #tpu.pipeline_mode<synchronous>, transform_indices = @transform_0, window_bounds = array<i64: 256, 128>}, {pipeline_mode = #tpu.pipeline_mode<synchronous>, transform_indices = @transform_1, window_bounds = array<i64: 240, 256>}, {pipeline_mode = #tpu.pipeline_mode<synchronous>, transform_indices = @transform_2, window_bounds = array<i64: 10, 2>}]} {
    %c0 = arith.constant 0 : index
    %c0_0 = arith.constant 0 : index
    %0 = vector.load %arg2[%c0, %c0_0] : memref<240x256xf32, #tpu.memory_space<vmem>>, vector<16x256xf32>
    %c224 = arith.constant 224 : index
    %c0_1 = arith.constant 0 : index
    %1 = vector.load %arg2[%c224, %c0_1] : memref<240x256xf32, #tpu.memory_space<vmem>>, vector<16x1xf32>
    %c0_2 = arith.constant 0 : index
    %c0_3 = arith.constant 0 : index
    %2 = vector.load %arg1[%c0_2, %c0_3] : memref<256x128xf32, #tpu.memory_space<vmem>>, vector<256x128xf32>
    %cst = arith.constant dense<0.000000e+00> : vector<16x128xf32>
    %3 = tpu.matmul %0, %2, %cst {dimension_numbers = #tpu.dot_dimension_numbers<[1], [0], [0], [1], [0, 0, 1, 1], [], []>} : vector<16x256xf32>, vector<256x128xf32>, vector<16x128xf32> -> vector<16x128xf32>
    %4 = vector.broadcast %1 : vector<16x1xf32> to vector<16x128xf32>
    %5 = arith.addf %3, %4 : vector<16x128xf32>
    %cst_4 = arith.constant 0.000000e+00 : f32
    %6 = vector.broadcast %cst_4 : f32 to vector<16x128xf32>
    %7 = arith.cmpf ogt, %5, %6 : vector<16x128xf32>
    %cst_5 = arith.constant 0.000000e+00 : f32
    %8 = vector.broadcast %cst_5 : f32 to vector<16x128xf32>
    %9 = arith.minimumf %5, %8 : vector<16x128xf32>
    %10 = math.exp %9 : vector<16x128xf32>
    %cst_6 = arith.constant 1.000000e+00 : f32
    %11 = vector.broadcast %cst_6 : f32 to vector<16x128xf32>
    %12 = arith.subf %10, %11 : vector<16x128xf32>
    %13 = arith.select %7, %5, %12 : vector<16x128xi1>, vector<16x128xf32>
    %c32 = arith.constant 32 : index
    %c0_7 = arith.constant 0 : index
    %14 = vector.load %arg2[%c32, %c0_7] : memref<240x256xf32, #tpu.memory_space<vmem>>, vector<128x62xf32>
    %cst_8 = arith.constant dense<0.000000e+00> : vector<16x62xf32>
    %15 = tpu.matmul %13, %14, %cst_8 {dimension_numbers = #tpu.dot_dimension_numbers<[1], [0], [0], [1], [0, 0, 1, 1], [], []>} : vector<16x128xf32>, vector<128x62xf32>, vector<16x62xf32> -> vector<16x62xf32>
    %16 = vector.extract_strided_slice %15 {offsets = [0, 0], sizes = [16, 47], strides = [1, 1]} : vector<16x62xf32> to vector<16x47xf32>
    %17 = vector.extract_strided_slice %15 {offsets = [0, 1], sizes = [16, 47], strides = [1, 1]} : vector<16x62xf32> to vector<16x47xf32>
    %18 = vector.extract_strided_slice %15 {offsets = [0, 2], sizes = [16, 47], strides = [1, 1]} : vector<16x62xf32> to vector<16x47xf32>
    %19 = vector.extract_strided_slice %15 {offsets = [0, 3], sizes = [16, 47], strides = [1, 1]} : vector<16x62xf32> to vector<16x47xf32>
    %20 = vector.extract_strided_slice %15 {offsets = [0, 4], sizes = [16, 47], strides = [1, 1]} : vector<16x62xf32> to vector<16x47xf32>
    %21 = vector.extract_strided_slice %15 {offsets = [0, 5], sizes = [16, 47], strides = [1, 1]} : vector<16x62xf32> to vector<16x47xf32>
    %22 = vector.extract_strided_slice %15 {offsets = [0, 6], sizes = [16, 47], strides = [1, 1]} : vector<16x62xf32> to vector<16x47xf32>
    %23 = vector.extract_strided_slice %15 {offsets = [0, 7], sizes = [16, 47], strides = [1, 1]} : vector<16x62xf32> to vector<16x47xf32>
    %24 = vector.extract_strided_slice %15 {offsets = [0, 8], sizes = [16, 47], strides = [1, 1]} : vector<16x62xf32> to vector<16x47xf32>
    %25 = vector.extract_strided_slice %15 {offsets = [0, 9], sizes = [16, 47], strides = [1, 1]} : vector<16x62xf32> to vector<16x47xf32>
    %26 = vector.extract_strided_slice %15 {offsets = [0, 10], sizes = [16, 47], strides = [1, 1]} : vector<16x62xf32> to vector<16x47xf32>
    %27 = vector.extract_strided_slice %15 {offsets = [0, 11], sizes = [16, 47], strides = [1, 1]} : vector<16x62xf32> to vector<16x47xf32>
    %28 = vector.extract_strided_slice %15 {offsets = [0, 12], sizes = [16, 47], strides = [1, 1]} : vector<16x62xf32> to vector<16x47xf32>
    %29 = vector.extract_strided_slice %15 {offsets = [0, 13], sizes = [16, 47], strides = [1, 1]} : vector<16x62xf32> to vector<16x47xf32>
    %30 = vector.extract_strided_slice %15 {offsets = [0, 14], sizes = [16, 47], strides = [1, 1]} : vector<16x62xf32> to vector<16x47xf32>
    %31 = vector.extract_strided_slice %15 {offsets = [0, 15], sizes = [16, 47], strides = [1, 1]} : vector<16x62xf32> to vector<16x47xf32>
    %32 = tpu.concatenate %16, %17, %18, %19, %20, %21, %22, %23, %24, %25, %26, %27, %28, %29, %30, %31 in 0 : vector<16x47xf32>, vector<16x47xf32>, vector<16x47xf32>, vector<16x47xf32>, vector<16x47xf32>, vector<16x47xf32>, vector<16x47xf32>, vector<16x47xf32>, vector<16x47xf32>, vector<16x47xf32>, vector<16x47xf32>, vector<16x47xf32>, vector<16x47xf32>, vector<16x47xf32>, vector<16x47xf32>, vector<16x47xf32> -> vector<256x47xf32>
    %c16 = arith.constant 16 : index
    %c0_9 = arith.constant 0 : index
    %33 = vector.load %arg2[%c16, %c0_9] : memref<240x256xf32, #tpu.memory_space<vmem>>, vector<16x256xf32>
    %c224_10 = arith.constant 224 : index
    %c1 = arith.constant 1 : index
    %34 = vector.load %arg2[%c224_10, %c1] : memref<240x256xf32, #tpu.memory_space<vmem>>, vector<16x1xf32>
    %cst_11 = arith.constant dense<0.000000e+00> : vector<16x47xf32>
    %35 = tpu.matmul %33, %32, %cst_11 {dimension_numbers = #tpu.dot_dimension_numbers<[1], [0], [0], [1], [0, 0, 1, 1], [], []>} : vector<16x256xf32>, vector<256x47xf32>, vector<16x47xf32> -> vector<16x47xf32>
    %36 = vector.broadcast %34 : vector<16x1xf32> to vector<16x47xf32>
    %37 = arith.addf %35, %36 : vector<16x47xf32>
    %cst_12 = arith.constant 0.000000e+00 : f32
    %38 = vector.broadcast %cst_12 : f32 to vector<16x47xf32>
    %39 = arith.cmpf ogt, %37, %38 : vector<16x47xf32>
    %cst_13 = arith.constant 0.000000e+00 : f32
    %40 = vector.broadcast %cst_13 : f32 to vector<16x47xf32>
    %41 = arith.minimumf %37, %40 : vector<16x47xf32>
    %42 = math.exp %41 : vector<16x47xf32>
    %cst_14 = arith.constant 1.000000e+00 : f32
    %43 = vector.broadcast %cst_14 : f32 to vector<16x47xf32>
    %44 = arith.subf %42, %43 : vector<16x47xf32>
    %45 = arith.select %39, %37, %44 : vector<16x47xi1>, vector<16x47xf32>
    %c160 = arith.constant 160 : index
    %c0_15 = arith.constant 0 : index
    %46 = vector.load %arg2[%c160, %c0_15] : memref<240x256xf32, #tpu.memory_space<vmem>>, vector<47x4xf32>
    %cst_16 = arith.constant dense<0.000000e+00> : vector<16x4xf32>
    %47 = tpu.matmul %45, %46, %cst_16 {dimension_numbers = #tpu.dot_dimension_numbers<[1], [0], [0], [1], [0, 0, 1, 1], [], []>} : vector<16x47xf32>, vector<47x4xf32>, vector<16x4xf32> -> vector<16x4xf32>
    %48 = vector.extract_strided_slice %47 {offsets = [0, 0], sizes = [16, 2], strides = [1, 1]} : vector<16x4xf32> to vector<16x2xf32>
    %49 = vector.extract_strided_slice %47 {offsets = [0, 2], sizes = [16, 2], strides = [1, 1]} : vector<16x4xf32> to vector<16x2xf32>
    %50 = tpu.concatenate %48, %49 in 0 : vector<16x2xf32>, vector<16x2xf32> -> vector<32x2xf32>
    %c208 = arith.constant 208 : index
    %c0_17 = arith.constant 0 : index
    %51 = vector.load %arg2[%c208, %c0_17] : memref<240x256xf32, #tpu.memory_space<vmem>>, vector<10x32xf32>
    %c224_18 = arith.constant 224 : index
    %c2 = arith.constant 2 : index
    %52 = vector.load %arg2[%c224_18, %c2] : memref<240x256xf32, #tpu.memory_space<vmem>>, vector<10x1xf32>
    %cst_19 = arith.constant dense<0.000000e+00> : vector<10x2xf32>
    %53 = tpu.matmul %51, %50, %cst_19 {dimension_numbers = #tpu.dot_dimension_numbers<[1], [0], [0], [1], [0, 0, 1, 1], [], []>} : vector<10x32xf32>, vector<32x2xf32>, vector<10x2xf32> -> vector<10x2xf32>
    %54 = vector.broadcast %52 : vector<10x1xf32> to vector<10x2xf32>
    %55 = arith.addf %53, %54 : vector<10x2xf32>
    %c0_20 = arith.constant 0 : index
    %c0_21 = arith.constant 0 : index
    %56 = vector.load %arg3[%c0_20, %c0_21] : memref<10x2xf32, #tpu.memory_space<vmem>>, vector<10x2xf32>
    tpu.vector_store %arg3[%c0_20, %c0_21], %55 {strides = array<i32>} : memref<10x2xf32, #tpu.memory_space<vmem>>, vector<10x2xf32>,
    return
  }
  func.func @transform_0(%arg0: i32) -> (i32, i32) {
    %c0_i32 = arith.constant 0 : i32
    %c0_i32_0 = arith.constant 0 : i32
    %c0_i32_1 = arith.constant 0 : i32
    return %c0_i32, %c0_i32_0 : i32, i32
  }
  func.func @transform_1(%arg0: i32) -> (i32, i32) {
    %c0_i32 = arith.constant 0 : i32
    %c0_i32_0 = arith.constant 0 : i32
    %c0_i32_1 = arith.constant 0 : i32
    return %c0_i32, %c0_i32_0 : i32, i32
  }
  func.func @transform_2(%arg0: i32) -> (i32, i32) {
    %c0_i32 = arith.constant 0 : i32
    %c0_i32_0 = arith.constant 0 : i32
    %c0_i32_1 = arith.constant 0 : i32
    return %c0_i32, %c0_i32_0 : i32, i32
  }
}

</mosaic_0001>

<llo_original>
// kernel: tpu_custom_call.1
$region0: #{tpu_custom_call.1}
  #allocation0 [shape = 'u32[]', space=smem, size = 0x4, offset = 0x4, fixed_abs, tag = 'smem constant byte address 0x4 - core index']
  #allocation1 [shape = 'u32[144,128]{1,0:T(1,128)}', space=vmem, size = 0x12000, scoped, tag = 'internal scratch']
  %s0 = inlined_call_operand.hbm [shape: f32[256,128], index: 0, kind: input, shape index: {}]
  %s1 = inlined_call_operand.hbm [shape: f32[240,256], index: 1, kind: input, shape index: {}]
  %s2 = inlined_call_operand.vmem [shape: f32[10,2], index: 2, kind: output, shape index: {}]
  %s3 = sld [smem:[#allocation0]]
  $region26: #{tpu_custom_call.1} parent=0
    _
  %s5 = ssub.s32 1, %s3
  %s6 = scalar_select 0, %s5, %s3
  $region1: #{tpu_custom_call.1} parent=0
    #allocation2 [shape = 'u8[131072]{0}', space=vmem, size = 0x20000, scoped, tag = 'input window, operand 0, single buffered']
    #allocation3 [shape = 's32[1]{0}', space=sflag, size = 0x4, scoped, tag = 'scoped memory for tpu_custom_call.1']
    #allocation4 [shape = 'u8[245760]{0}', space=vmem, size = 0x3c000, scoped, tag = 'input window, operand 1, single buffered']
    #allocation5 [shape = 's32[1]{0}', space=sflag, size = 0x4, scoped, tag = 'scoped memory for tpu_custom_call.1']
    %7 = vsyncpa [#allocation3], 0
    %8 = vsyncpa [#allocation5], 0
    // Predicated region
    $region2: #{tpu_custom_call.1} parent=1 // pred_check
      _
    $region3: #{tpu_custom_call.1} parent=1 // pred_check_branch
      %10 = sbr.rel (0) target = $region5
    $region4: #{tpu_custom_call.1} parent=1 // pred_region
      %s12 = ssub.s32 4096, 4096
      %13 = vsyncadd [#allocation3], %s12
      %s14 = sshll.u32 [#allocation2], 4
      %s15 = int_to_ptr.vmem [resolvable:$true] %s14
      %20 = dma.hbm_to_vmem [thread:$0]  %s0, 4096, %s15, [#allocation3], 128, 128, 8
    $region5: #{tpu_custom_call.1} parent=1 // pred_fallthru
      _
    // Predicated region
    $region6: #{tpu_custom_call.1} parent=1 // pred_check
      _
    $region7: #{tpu_custom_call.1} parent=1 // pred_check_branch
      %22 = sbr.rel (0) target = $region9
    $region8: #{tpu_custom_call.1} parent=1 // pred_region
      %s24 = ssub.s32 7680, 7680
      %25 = vsyncadd [#allocation5], %s24
      %s26 = sshll.u32 [#allocation4], 4
      %s27 = int_to_ptr.vmem [resolvable:$true] %s26
      %32 = dma.hbm_to_vmem [thread:$0]  %s1, 7680, %s27, [#allocation5], 256, 256, 16
    $region9: #{tpu_custom_call.1} parent=1 // pred_fallthru
      _
    // Predicated region
    $region10: #{tpu_custom_call.1} parent=1 // pred_check
      _
    $region11: #{tpu_custom_call.1} parent=1 // pred_check_branch
      %34 = sbr.rel (0) target = $region13
    $region12: #{tpu_custom_call.1} parent=1 // pred_region
      %35 = dma.done [#allocation3], 4096
    $region13: #{tpu_custom_call.1} parent=1 // pred_fallthru
      _
    // Predicated region
    $region14: #{tpu_custom_call.1} parent=1 // pred_check
      _
    $region15: #{tpu_custom_call.1} parent=1 // pred_check_branch
      %37 = sbr.rel (0) target = $region17
    $region16: #{tpu_custom_call.1} parent=1 // pred_region
      %38 = dma.done [#allocation5], 7680
    $region17: #{tpu_custom_call.1} parent=1 // pred_fallthru
      _
    %v39 = vld [vmem:[#allocation4] sm:$0xff]
    %v40 = vld [vmem:[#allocation4 + $0x8] sm:$0xff]
    %v41 = vld [vmem:[#allocation4 + $0x10] sm:$0xff]
    %v42 = vld [vmem:[#allocation4 + $0x18] sm:$0xff]
    %v43 = vld [vmem:[#allocation4 + $0x1c0] sm:$0xff]
    %v44 = vld [vmem:[#allocation4 + $0x1d0] sm:$0xff]
    %v45 = vld [vmem:[#allocation2] sm:$0xff]
    %v46 = vld [vmem:[#allocation2 + $0x8] sm:$0xff]
    %v47 = vld [vmem:[#allocation2 + $0x10] sm:$0xff]
    %v48 = vld [vmem:[#allocation2 + $0x18] sm:$0xff]
    %v49 = vld [vmem:[#allocation2 + $0x20] sm:$0xff]
    %v50 = vld [vmem:[#allocation2 + $0x28] sm:$0xff]
    %v51 = vld [vmem:[#allocation2 + $0x30] sm:$0xff]
    %v52 = vld [vmem:[#allocation2 + $0x38] sm:$0xff]
    %v53 = vld [vmem:[#allocation2 + $0x40] sm:$0xff]
    %v54 = vld [vmem:[#allocation2 + $0x48] sm:$0xff]
    %v55 = vld [vmem:[#allocation2 + $0x50] sm:$0xff]
    %v56 = vld [vmem:[#allocation2 + $0x58] sm:$0xff]
    %v57 = vld [vmem:[#allocation2 + $0x60] sm:$0xff]
    %v58 = vld [vmem:[#allocation2 + $0x68] sm:$0xff]
    %v59 = vld [vmem:[#allocation2 + $0x70] sm:$0xff]
    %v60 = vld [vmem:[#allocation2 + $0x78] sm:$0xff]
    %v61 = vld [vmem:[#allocation2 + $0x80] sm:$0xff]
    %v62 = vld [vmem:[#allocation2 + $0x88] sm:$0xff]
    %v63 = vld [vmem:[#allocation2 + $0x90] sm:$0xff]
    %v64 = vld [vmem:[#allocation2 + $0x98] sm:$0xff]
    %v65 = vld [vmem:[#allocation2 + $0xa0] sm:$0xff]
    %v66 = vld [vmem:[#allocation2 + $0xa8] sm:$0xff]
    %v67 = vld [vmem:[#allocation2 + $0xb0] sm:$0xff]
    %v68 = vld [vmem:[#allocation2 + $0xb8] sm:$0xff]
    %v69 = vld [vmem:[#allocation2 + $0xc0] sm:$0xff]
    %v70 = vld [vmem:[#allocation2 + $0xc8] sm:$0xff]
    %v71 = vld [vmem:[#allocation2 + $0xd0] sm:$0xff]
    %v72 = vld [vmem:[#allocation2 + $0xd8] sm:$0xff]
    %v73 = vld [vmem:[#allocation2 + $0xe0] sm:$0xff]
    %v74 = vld [vmem:[#allocation2 + $0xe8] sm:$0xff]
    %v75 = vld [vmem:[#allocation2 + $0xf0] sm:$0xff]
    %v76 = vld [vmem:[#allocation2 + $0xf8] sm:$0xff]
    %78 = vset.pattern.permute.xlu0 0
    %79 = vperm.xlu0 %78, %v43
    %v80 = vpop.permute.xlu0 %79
    %83 = vset.pattern.permute.xlu0 0
    %84 = vperm.xlu0 %83, %v44
    %v85 = vpop.permute.xlu0 %84
    %87 = vmatprep.subr.mxu0 0.0
    %88 = vmatpush1.msra.mxu0 %v60
    %89 = vmatprep.subr.mxu0 0.0
    %90 = vmatpush1.msra.mxu0 %v59
    %91 = vmatprep.subr.mxu0 0.0
    %92 = vmatpush1.msra.mxu0 %v58
    %93 = vmatprep.subr.mxu0 0.0
    %94 = vmatpush1.msra.mxu0 %v57
    %95 = vmatprep.subr.mxu0 0.0
    %96 = vmatpush1.msra.mxu0 %v56
    %97 = vmatprep.subr.mxu0 0.0
    %98 = vmatpush1.msra.mxu0 %v55
    %99 = vmatprep.subr.mxu0 0.0
    %100 = vmatpush1.msra.mxu0 %v54
    %101 = vmatprep.subr.mxu0 0.0
    %102 = vmatpush1.msra.mxu0 %v53
    %103 = vmatprep.subr.mxu0 0.0
    %104 = vmatpush1.msra.mxu0 %v52
    %105 = vmatprep.subr.mxu0 0.0
    %106 = vmatpush1.msra.mxu0 %v51
    %107 = vmatprep.subr.mxu0 0.0
    %108 = vmatpush1.msra.mxu0 %v50
    %109 = vmatprep.subr.mxu0 0.0
    %110 = vmatpush1.msra.mxu0 %v49
    %111 = vmatprep.subr.mxu0 0.0
    %112 = vmatpush1.msra.mxu0 %v48
    %113 = vmatprep.subr.mxu0 0.0
    %114 = vmatpush1.msra.mxu0 %v47
    %115 = vmatprep.subr.mxu0 0.0
    %116 = vmatpush1.msra.mxu0 %v46
    %117 = vmatprep.subr.mxu0 0.0
    %118 = vmatpush1.msra.mxu0 %v45
    %119 = vmatprep.subr.mxu0 0.0
    %120 = vmatpush2.msra.mxu0 %v76
    %121 = vmatprep.subr.mxu0 0.0
    %122 = vmatpush2.msra.mxu0 %v75
    %123 = vmatprep.subr.mxu0 0.0
    %124 = vmatpush2.msra.mxu0 %v74
    %125 = vmatprep.subr.mxu0 0.0
    %126 = vmatpush2.msra.mxu0 %v73
    %127 = vmatprep.subr.mxu0 0.0
    %128 = vmatpush2.msra.mxu0 %v72
    %129 = vmatprep.subr.mxu0 0.0
    %130 = vmatpush2.msra.mxu0 %v71
    %131 = vmatprep.subr.mxu0 0.0
    %132 = vmatpush2.msra.mxu0 %v70
    %133 = vmatprep.subr.mxu0 0.0
    %134 = vmatpush2.msra.mxu0 %v69
    %135 = vmatprep.subr.mxu0 0.0
    %136 = vmatpush2.msra.mxu0 %v68
    %137 = vmatprep.subr.mxu0 0.0
    %138 = vmatpush2.msra.mxu0 %v67
    %139 = vmatprep.subr.mxu0 0.0
    %140 = vmatpush2.msra.mxu0 %v66
    %141 = vmatprep.subr.mxu0 0.0
    %142 = vmatpush2.msra.mxu0 %v65
    %143 = vmatprep.subr.mxu0 0.0
    %144 = vmatpush2.msra.mxu0 %v64
    %145 = vmatprep.subr.mxu0 0.0
    %146 = vmatpush2.msra.mxu0 %v63
    %147 = vmatprep.subr.mxu0 0.0
    %148 = vmatpush2.msra.mxu0 %v62
    %149 = vmatprep.subr.mxu0 0.0
    %150 = vmatpush2.msra.mxu0 %v61
    %151 = vmatprep.mubr.f32.mxu0 %v40
    %152 = vmatmul.mubr.f32.gmra.mxu0 %v39
    %v153 = vpop.f32.mrf.mxu0
    %v154 = vadd.f32 %v80, %v153
    %v155 = vpop.f32.mrf.mxu0
    %156 = vmatprep.mubr.f32.mxu0 %v42
    %157 = vmatmul.mubr.f32.gmra.mxu0 %v41
    %v158 = vpop.f32.mrf.mxu0
    %v159 = vadd.f32 %v85, %v158
    %v160 = vpop.f32.mrf.mxu0
    %161 = vdwg.mxu0
    %vm162 = vcmp.gt.f32.partialorder %v154, 0.0
    %vm163 = vcmp.gt.f32.partialorder %v159, 0.0
    %v164 = vmin.f32 %v154, 0.0
    %v165 = vmin.f32 %v159, 0.0
    %v166 = vmul.f32 %v164, 1.442695
    %v167 = vpow.pop %v166
    %v168 = vmul.f32 %v165, 1.442695
    %v169 = vpow.pop %v168
    %v170 = vsub.f32 %v167, 1.0
    %v171 = vsub.f32 %v169, 1.0
    %v172 = vsel %vm162, %v154, %v170
    %v173 = vsel %vm163, %v159, %v171
    %v174 = vld [vmem:[#allocation4 + $0x40] sm:$0xff]
    %v175 = vld [vmem:[#allocation4 + $0x50] sm:$0xff]
    %v176 = vld [vmem:[#allocation4 + $0x60] sm:$0xff]
    %v177 = vld [vmem:[#allocation4 + $0x70] sm:$0xff]
    %v178 = vld [vmem:[#allocation4 + $0x80] sm:$0xff]
    %v179 = vld [vmem:[#allocation4 + $0x90] sm:$0xff]
    %v180 = vld [vmem:[#allocation4 + $0xa0] sm:$0xff]
    %v181 = vld [vmem:[#allocation4 + $0xb0] sm:$0xff]
    %v182 = vld [vmem:[#allocation4 + $0xc0] sm:$0xff]
    %v183 = vld [vmem:[#allocation4 + $0xd0] sm:$0xff]
    %v184 = vld [vmem:[#allocation4 + $0xe0] sm:$0xff]
    %v185 = vld [vmem:[#allocation4 + $0xf0] sm:$0xff]
    %v186 = vld [vmem:[#allocation4 + $0x100] sm:$0xff]
    %v187 = vld [vmem:[#allocation4 + $0x110] sm:$0xff]
    %v188 = vld [vmem:[#allocation4 + $0x120] sm:$0xff]
    %v189 = vld [vmem:[#allocation4 + $0x130] sm:$0xff]
    %190 = vmatprep.subr.mxu0 0.0
    %191 = vmatpush1.msra.mxu0 %v189
    %192 = vmatprep.subr.mxu0 0.0
    %193 = vmatpush1.msra.mxu0 %v188
    %194 = vmatprep.subr.mxu0 0.0
    %195 = vmatpush1.msra.mxu0 %v187
    %196 = vmatprep.subr.mxu0 0.0
    %197 = vmatpush1.msra.mxu0 %v186
    %198 = vmatprep.subr.mxu0 0.0
    %199 = vmatpush1.msra.mxu0 %v185
    %200 = vmatprep.subr.mxu0 0.0
    %201 = vmatpush1.msra.mxu0 %v184
    %202 = vmatprep.subr.mxu0 0.0
    %203 = vmatpush1.msra.mxu0 %v183
    %204 = vmatprep.subr.mxu0 0.0
    %205 = vmatpush1.msra.mxu0 %v182
    %206 = vmatprep.subr.mxu0 0.0
    %207 = vmatpush1.msra.mxu0 %v181
    %208 = vmatprep.subr.mxu0 0.0
    %209 = vmatpush1.msra.mxu0 %v180
    %210 = vmatprep.subr.mxu0 0.0
    %211 = vmatpush1.msra.mxu0 %v179
    %212 = vmatprep.subr.mxu0 0.0
    %213 = vmatpush1.msra.mxu0 %v178
    %214 = vmatprep.subr.mxu0 0.0
    %215 = vmatpush1.msra.mxu0 %v177
    %216 = vmatprep.subr.mxu0 0.0
    %217 = vmatpush1.msra.mxu0 %v176
    %218 = vmatprep.subr.mxu0 0.0
    %219 = vmatpush1.msra.mxu0 %v175
    %220 = vmatprep.subr.mxu0 0.0
    %221 = vmatpush1.msra.mxu0 %v174
    %222 = vmatprep.subr.mxu0 0.0
    %223 = vmatpush2.msra.mxu0 0.0
    %224 = vmatprep.subr.mxu0 0.0
    %225 = vmatpush2.msra.mxu0 0.0
    %226 = vmatprep.subr.mxu0 0.0
    %227 = vmatpush2.msra.mxu0 0.0
    %228 = vmatprep.subr.mxu0 0.0
    %229 = vmatpush2.msra.mxu0 0.0
    %230 = vmatprep.subr.mxu0 0.0
    %231 = vmatpush2.msra.mxu0 0.0
    %232 = vmatprep.subr.mxu0 0.0
    %233 = vmatpush2.msra.mxu0 0.0
    %234 = vmatprep.subr.mxu0 0.0
    %235 = vmatpush2.msra.mxu0 0.0
    %236 = vmatprep.subr.mxu0 0.0
    %237 = vmatpush2.msra.mxu0 0.0
    %238 = vmatprep.subr.mxu0 0.0
    %239 = vmatpush2.msra.mxu0 0.0
    %240 = vmatprep.subr.mxu0 0.0
    %241 = vmatpush2.msra.mxu0 0.0
    %242 = vmatprep.subr.mxu0 0.0
    %243 = vmatpush2.msra.mxu0 0.0
    %244 = vmatprep.subr.mxu0 0.0
    %245 = vmatpush2.msra.mxu0 0.0
    %246 = vmatprep.subr.mxu0 0.0
    %247 = vmatpush2.msra.mxu0 0.0
    %248 = vmatprep.subr.mxu0 0.0
    %249 = vmatpush2.msra.mxu0 0.0
    %250 = vmatprep.subr.mxu0 0.0
    %251 = vmatpush2.msra.mxu0 0.0
    %252 = vmatprep.subr.mxu0 0.0
    %253 = vmatpush2.msra.mxu0 0.0
    %254 = vmatprep.mubr.f32.mxu0 0.0
    %255 = vmatmul.mubr.f32.gmra.mxu0 %v172
    %v256 = vpop.f32.mrf.mxu0
    %v257 = vadd.f32 0.0, %v256
    %v258 = vpop.f32.mrf.mxu0
    %259 = vmatprep.mubr.f32.mxu0 0.0
    %260 = vmatmul.mubr.f32.gmra.mxu0 %v173
    %v261 = vpop.f32.mrf.mxu0
    %v262 = vadd.f32 0.0, %v261
    %v263 = vpop.f32.mrf.mxu0
    %264 = vdwg.mxu0
    %267 = vrot.lane.b32.xlu0 %v257, 127
    %v268 = vpop.permute.xlu0 %267
    %269 = vrot.lane.b32.xlu0 %v262, 127
    %v270 = vpop.permute.xlu0 %269
    %273 = vrot.lane.b32.xlu0 %v257, 126
    %v274 = vpop.permute.xlu0 %273
    %275 = vrot.lane.b32.xlu0 %v262, 126
    %v276 = vpop.permute.xlu0 %275
    %279 = vrot.lane.b32.xlu0 %v257, 125
    %v280 = vpop.permute.xlu0 %279
    %281 = vrot.lane.b32.xlu0 %v262, 125
    %v282 = vpop.permute.xlu0 %281
    %285 = vrot.lane.b32.xlu0 %v257, 124
    %v286 = vpop.permute.xlu0 %285
    %287 = vrot.lane.b32.xlu0 %v262, 124
    %v288 = vpop.permute.xlu0 %287
    %291 = vrot.lane.b32.xlu0 %v257, 123
    %v292 = vpop.permute.xlu0 %291
    %293 = vrot.lane.b32.xlu0 %v262, 123
    %v294 = vpop.permute.xlu0 %293
    %297 = vrot.lane.b32.xlu0 %v257, 122
    %v298 = vpop.permute.xlu0 %297
    %299 = vrot.lane.b32.xlu0 %v262, 122
    %v300 = vpop.permute.xlu0 %299
    %303 = vrot.lane.b32.xlu0 %v257, 121
    %v304 = vpop.permute.xlu0 %303
    %305 = vrot.lane.b32.xlu0 %v262, 121
    %v306 = vpop.permute.xlu0 %305
    %309 = vrot.lane.b32.xlu0 %v257, 120
    %v310 = vpop.permute.xlu0 %309
    %311 = vrot.lane.b32.xlu0 %v262, 120
    %v312 = vpop.permute.xlu0 %311
    %315 = vrot.lane.b32.xlu0 %v257, 119
    %v316 = vpop.permute.xlu0 %315
    %317 = vrot.lane.b32.xlu0 %v262, 119
    %v318 = vpop.permute.xlu0 %317
    %321 = vrot.lane.b32.xlu0 %v257, 118
    %v322 = vpop.permute.xlu0 %321
    %323 = vrot.lane.b32.xlu0 %v262, 118
    %v324 = vpop.permute.xlu0 %323
    %327 = vrot.lane.b32.xlu0 %v257, 117
    %v328 = vpop.permute.xlu0 %327
    %329 = vrot.lane.b32.xlu0 %v262, 117
    %v330 = vpop.permute.xlu0 %329
    %333 = vrot.lane.b32.xlu0 %v257, 116
    %v334 = vpop.permute.xlu0 %333
    %335 = vrot.lane.b32.xlu0 %v262, 116
    %v336 = vpop.permute.xlu0 %335
    %339 = vrot.lane.b32.xlu0 %v257, 115
    %v340 = vpop.permute.xlu0 %339
    %341 = vrot.lane.b32.xlu0 %v262, 115
    %v342 = vpop.permute.xlu0 %341
    %345 = vrot.lane.b32.xlu0 %v257, 114
    %v346 = vpop.permute.xlu0 %345
    %347 = vrot.lane.b32.xlu0 %v262, 114
    %v348 = vpop.permute.xlu0 %347
    %351 = vrot.lane.b32.xlu0 %v257, 113
    %v352 = vpop.permute.xlu0 %351
    %353 = vrot.lane.b32.xlu0 %v262, 113
    %v354 = vpop.permute.xlu0 %353
    %v357 = vld [vmem:[#allocation4 + $0x20] sm:$0xff]
    %v358 = vld [vmem:[#allocation4 + $0x28] sm:$0xff]
    %v359 = vld [vmem:[#allocation4 + $0x30] sm:$0xff]
    %v360 = vld [vmem:[#allocation4 + $0x38] sm:$0xff]
    %361 = vset.pattern.permute.xlu0 1
    %362 = vperm.xlu0 %361, %v43
    %v363 = vpop.permute.xlu0 %362
    %365 = vset.pattern.permute.xlu0 1
    %366 = vperm.xlu0 %365, %v44
    %v367 = vpop.permute.xlu0 %366
    %369 = vmatprep.subr.mxu0 0.0
    %370 = vmatpush1.msra.mxu0 %v306
    %371 = vmatprep.subr.mxu0 0.0
    %372 = vmatpush1.msra.mxu0 %v304
    %373 = vmatprep.subr.mxu0 0.0
    %374 = vmatpush1.msra.mxu0 %v300
    %375 = vmatprep.subr.mxu0 0.0
    %376 = vmatpush1.msra.mxu0 %v298
    %377 = vmatprep.subr.mxu0 0.0
    %378 = vmatpush1.msra.mxu0 %v294
    %379 = vmatprep.subr.mxu0 0.0
    %380 = vmatpush1.msra.mxu0 %v292
    %381 = vmatprep.subr.mxu0 0.0
    %382 = vmatpush1.msra.mxu0 %v288
    %383 = vmatprep.subr.mxu0 0.0
    %384 = vmatpush1.msra.mxu0 %v286
    %385 = vmatprep.subr.mxu0 0.0
    %386 = vmatpush1.msra.mxu0 %v282
    %387 = vmatprep.subr.mxu0 0.0
    %388 = vmatpush1.msra.mxu0 %v280
    %389 = vmatprep.subr.mxu0 0.0
    %390 = vmatpush1.msra.mxu0 %v276
    %391 = vmatprep.subr.mxu0 0.0
    %392 = vmatpush1.msra.mxu0 %v274
    %393 = vmatprep.subr.mxu0 0.0
    %394 = vmatpush1.msra.mxu0 %v270
    %395 = vmatprep.subr.mxu0 0.0
    %396 = vmatpush1.msra.mxu0 %v268
    %397 = vmatprep.subr.mxu0 0.0
    %398 = vmatpush1.msra.mxu0 %v262
    %399 = vmatprep.subr.mxu0 0.0
    %400 = vmatpush1.msra.mxu0 %v257
    %401 = vmatprep.subr.mxu0 0.0
    %402 = vmatpush2.msra.mxu0 %v354
    %403 = vmatprep.subr.mxu0 0.0
    %404 = vmatpush2.msra.mxu0 %v352
    %405 = vmatprep.subr.mxu0 0.0
    %406 = vmatpush2.msra.mxu0 %v348
    %407 = vmatprep.subr.mxu0 0.0
    %408 = vmatpush2.msra.mxu0 %v346
    %409 = vmatprep.subr.mxu0 0.0
    %410 = vmatpush2.msra.mxu0 %v342
    %411 = vmatprep.subr.mxu0 0.0
    %412 = vmatpush2.msra.mxu0 %v340
    %413 = vmatprep.subr.mxu0 0.0
    %414 = vmatpush2.msra.mxu0 %v336
    %415 = vmatprep.subr.mxu0 0.0
    %416 = vmatpush2.msra.mxu0 %v334
    %417 = vmatprep.subr.mxu0 0.0
    %418 = vmatpush2.msra.mxu0 %v330
    %419 = vmatprep.subr.mxu0 0.0
    %420 = vmatpush2.msra.mxu0 %v328
    %421 = vmatprep.subr.mxu0 0.0
    %422 = vmatpush2.msra.mxu0 %v324
    %423 = vmatprep.subr.mxu0 0.0
    %424 = vmatpush2.msra.mxu0 %v322
    %425 = vmatprep.subr.mxu0 0.0
    %426 = vmatpush2.msra.mxu0 %v318
    %427 = vmatprep.subr.mxu0 0.0
    %428 = vmatpush2.msra.mxu0 %v316
    %429 = vmatprep.subr.mxu0 0.0
    %430 = vmatpush2.msra.mxu0 %v312
    %431 = vmatprep.subr.mxu0 0.0
    %432 = vmatpush2.msra.mxu0 %v310
    %433 = vmatprep.mubr.f32.mxu0 %v358
    %434 = vmatmul.mubr.f32.gmra.mxu0 %v357
    %v435 = vpop.f32.mrf.mxu0
    %v436 = vadd.f32 %v363, %v435
    %v437 = vpop.f32.mrf.mxu0
    %438 = vmatprep.mubr.f32.mxu0 %v360
    %439 = vmatmul.mubr.f32.gmra.mxu0 %v359
    %v440 = vpop.f32.mrf.mxu0
    %v441 = vadd.f32 %v367, %v440
    %v442 = vpop.f32.mrf.mxu0
    %443 = vdwg.mxu0
    %vm444 = vcmp.gt.f32.partialorder %v436, 0.0
    %vm445 = vcmp.gt.f32.partialorder %v441, 0.0
    %v446 = vmin.f32 %v436, 0.0
    %v447 = vmin.f32 %v441, 0.0
    %v448 = vmul.f32 %v446, 1.442695
    %v449 = vpow.pop %v448
    %v450 = vmul.f32 %v447, 1.442695
    %v451 = vpow.pop %v450
    %v452 = vsub.f32 %v449, 1.0
    %v453 = vsub.f32 %v451, 1.0
    %v454 = vsel %vm444, %v436, %v452
    %v455 = vsel %vm445, %v441, %v453
    %v456 = vld [vmem:[#allocation4 + $0x140] sm:$0xff]
    %v457 = vld [vmem:[#allocation4 + $0x150] sm:$0xff]
    %v458 = vld [vmem:[#allocation4 + $0x160] sm:$0xff]
    %v459 = vld [vmem:[#allocation4 + $0x170] sm:$0xff]
    %v460 = vld [vmem:[#allocation4 + $0x180] sm:$0xff]
    %v461 = vld [vmem:[#allocation4 + $0x190] sm:$0x7f]
    %vm462 = vcmask 384000
    %v464 = vsel %vm462, %v454, 0
    %v467 = vsel %vm462, %v455, 0
    %vm469 = vcmask 1046528
    %v471 = vsel %vm469, %v461, 0
    %473 = vmatprep.subr.mxu0 0.0
    %474 = vmatpush1.msra.mxu0 0.0
    %475 = vmatprep.subr.mxu0 0.0
    %476 = vmatpush1.msra.mxu0 0.0
    %477 = vmatprep.subr.mxu0 0.0
    %478 = vmatpush1.msra.mxu0 0.0
    %479 = vmatprep.subr.mxu0 0.0
    %480 = vmatpush1.msra.mxu0 0.0
    %481 = vmatprep.subr.mxu0 0.0
    %482 = vmatpush1.msra.mxu0 0.0
    %483 = vmatprep.subr.mxu0 0.0
    %484 = vmatpush1.msra.mxu0 0.0
    %485 = vmatprep.subr.mxu0 0.0
    %486 = vmatpush1.msra.mxu0 0.0
    %487 = vmatprep.subr.mxu0 0.0
    %488 = vmatpush1.msra.mxu0 0.0
    %489 = vmatprep.subr.mxu0 0.0
    %490 = vmatpush1.msra.mxu0 0.0
    %491 = vmatprep.subr.mxu0 0.0
    %492 = vmatpush1.msra.mxu0 0.0
    %493 = vmatprep.subr.mxu0 0.0
    %494 = vmatpush1.msra.mxu0 %v471
    %495 = vmatprep.subr.mxu0 0.0
    %496 = vmatpush1.msra.mxu0 %v460
    %497 = vmatprep.subr.mxu0 0.0
    %498 = vmatpush1.msra.mxu0 %v459
    %499 = vmatprep.subr.mxu0 0.0
    %500 = vmatpush1.msra.mxu0 %v458
    %501 = vmatprep.subr.mxu0 0.0
    %502 = vmatpush1.msra.mxu0 %v457
    %503 = vmatprep.subr.mxu0 0.0
    %504 = vmatpush1.msra.mxu0 %v456
    %505 = vmatprep.subr.mxu0 0.0
    %506 = vmatpush2.msra.mxu0 0.0
    %507 = vmatprep.subr.mxu0 0.0
    %508 = vmatpush2.msra.mxu0 0.0
    %509 = vmatprep.subr.mxu0 0.0
    %510 = vmatpush2.msra.mxu0 0.0
    %511 = vmatprep.subr.mxu0 0.0
    %512 = vmatpush2.msra.mxu0 0.0
    %513 = vmatprep.subr.mxu0 0.0
    %514 = vmatpush2.msra.mxu0 0.0
    %515 = vmatprep.subr.mxu0 0.0
    %516 = vmatpush2.msra.mxu0 0.0
    %517 = vmatprep.subr.mxu0 0.0
    %518 = vmatpush2.msra.mxu0 0.0
    %519 = vmatprep.subr.mxu0 0.0
    %520 = vmatpush2.msra.mxu0 0.0
    %521 = vmatprep.subr.mxu0 0.0
    %522 = vmatpush2.msra.mxu0 0.0
    %523 = vmatprep.subr.mxu0 0.0
    %524 = vmatpush2.msra.mxu0 0.0
    %525 = vmatprep.subr.mxu0 0.0
    %526 = vmatpush2.msra.mxu0 0.0
    %527 = vmatprep.subr.mxu0 0.0
    %528 = vmatpush2.msra.mxu0 0.0
    %529 = vmatprep.subr.mxu0 0.0
    %530 = vmatpush2.msra.mxu0 0.0
    %531 = vmatprep.subr.mxu0 0.0
    %532 = vmatpush2.msra.mxu0 0.0
    %533 = vmatprep.subr.mxu0 0.0
    %534 = vmatpush2.msra.mxu0 0.0
    %535 = vmatprep.subr.mxu0 0.0
    %536 = vmatpush2.msra.mxu0 0.0
    %537 = vmatprep.mubr.f32.mxu0 0.0
    %538 = vmatmul.mubr.f32.gmra.mxu0 %v464
    %v539 = vpop.f32.mrf.mxu0
    %v540 = vadd.f32 0.0, %v539
    %v541 = vpop.f32.mrf.mxu0
    %542 = vmatprep.mubr.f32.mxu0 0.0
    %543 = vmatmul.mubr.f32.gmra.mxu0 %v467
    %v544 = vpop.f32.mrf.mxu0
    %v545 = vadd.f32 0.0, %v544
    %v546 = vpop.f32.mrf.mxu0
    %547 = vdwg.mxu0
    %550 = vrot.lane.b32.xlu0 %v540, 126
    %v551 = vpop.permute.xlu0 %550
    %552 = vrot.lane.b32.xlu0 %v545, 126
    %v553 = vpop.permute.xlu0 %552
    %v556 = vld [vmem:[#allocation4 + $0x1a0] sm:$0xff]
    %v557 = vld [vmem:[#allocation4 + $0x1b0] sm:$0x3]
    %v558 = vld [vmem:[#allocation4 + $0x1d0] sm:$0x3]
    %559 = vset.pattern.permute.xlu0 2
    %560 = vperm.xlu0 %559, %v43
    %v561 = vpop.permute.xlu0 %560
    %564 = vset.pattern.permute.xlu0 2
    %565 = vperm.xlu0 %564, %v558
    %v566 = vpop.permute.xlu0 %565
    %vm568 = vcmask 261120
    %v570 = vsel %vm568, %v556, 0
    %v573 = vsel %vm568, %v557, 0
    %575 = vmatprep.subr.mxu0 0.0
    %576 = vmatpush1.msra.mxu0 0.0
    %577 = vmatprep.subr.mxu0 0.0
    %578 = vmatpush1.msra.mxu0 0.0
    %579 = vmatprep.subr.mxu0 0.0
    %580 = vmatpush1.msra.mxu0 0.0
    %581 = vmatprep.subr.mxu0 0.0
    %582 = vmatpush1.msra.mxu0 0.0
    %583 = vmatprep.subr.mxu0 0.0
    %584 = vmatpush1.msra.mxu0 0.0
    %585 = vmatprep.subr.mxu0 0.0
    %586 = vmatpush1.msra.mxu0 0.0
    %587 = vmatprep.subr.mxu0 0.0
    %588 = vmatpush1.msra.mxu0 0.0
    %589 = vmatprep.subr.mxu0 0.0
    %590 = vmatpush1.msra.mxu0 0.0
    %591 = vmatprep.subr.mxu0 0.0
    %592 = vmatpush1.msra.mxu0 0.0
    %593 = vmatprep.subr.mxu0 0.0
    %594 = vmatpush1.msra.mxu0 0.0
    %595 = vmatprep.subr.mxu0 0.0
    %596 = vmatpush1.msra.mxu0 0.0
    %597 = vmatprep.subr.mxu0 0.0
    %598 = vmatpush1.msra.mxu0 0.0
    %599 = vmatprep.subr.mxu0 0.0
    %600 = vmatpush1.msra.mxu0 %v553
    %601 = vmatprep.subr.mxu0 0.0
    %602 = vmatpush1.msra.mxu0 %v551
    %603 = vmatprep.subr.mxu0 0.0
    %604 = vmatpush1.msra.mxu0 %v545
    %605 = vmatprep.subr.mxu0 0.0
    %606 = vmatpush1.msra.mxu0 %v540
    %607 = vmatprep.subr.mxu0 0.0
    %608 = vmatpush2.msra.mxu0 0.0
    %609 = vmatprep.subr.mxu0 0.0
    %610 = vmatpush2.msra.mxu0 0.0
    %611 = vmatprep.subr.mxu0 0.0
    %612 = vmatpush2.msra.mxu0 0.0
    %613 = vmatprep.subr.mxu0 0.0
    %614 = vmatpush2.msra.mxu0 0.0
    %615 = vmatprep.subr.mxu0 0.0
    %616 = vmatpush2.msra.mxu0 0.0
    %617 = vmatprep.subr.mxu0 0.0
    %618 = vmatpush2.msra.mxu0 0.0
    %619 = vmatprep.subr.mxu0 0.0
    %620 = vmatpush2.msra.mxu0 0.0
    %621 = vmatprep.subr.mxu0 0.0
    %622 = vmatpush2.msra.mxu0 0.0
    %623 = vmatprep.subr.mxu0 0.0
    %624 = vmatpush2.msra.mxu0 0.0
    %625 = vmatprep.subr.mxu0 0.0
    %626 = vmatpush2.msra.mxu0 0.0
    %627 = vmatprep.subr.mxu0 0.0
    %628 = vmatpush2.msra.mxu0 0.0
    %629 = vmatprep.subr.mxu0 0.0
    %630 = vmatpush2.msra.mxu0 0.0
    %631 = vmatprep.subr.mxu0 0.0
    %632 = vmatpush2.msra.mxu0 0.0
    %633 = vmatprep.subr.mxu0 0.0
    %634 = vmatpush2.msra.mxu0 0.0
    %635 = vmatprep.subr.mxu0 0.0
    %636 = vmatpush2.msra.mxu0 0.0
    %637 = vmatprep.subr.mxu0 0.0
    %638 = vmatpush2.msra.mxu0 0.0
    %639 = vmatprep.mubr.f32.mxu0 0.0
    %640 = vmatmul.mubr.f32.gmra.mxu0 %v570
    %v641 = vpop.f32.mrf.mxu0
    %v642 = vadd.f32 %v561, %v641
    %v643 = vpop.f32.mrf.mxu0
    %644 = vmatprep.mubr.f32.mxu0 0.0
    %645 = vmatmul.mubr.f32.gmra.mxu0 %v573
    %v646 = vpop.f32.mrf.mxu0
    %v647 = vadd.f32 %v566, %v646
    %v648 = vpop.f32.mrf.mxu0
    %649 = vdwg.mxu0
    %vm650 = vcmask 15360
    %651 = vst.msk [vmem:[%s2] sm:$0xff] %vm650, %v642
    %vm652 = vcmask 9216
    %653 = vst.msk [vmem:[%s2 + $0x8] sm:$0x3] %vm652, %v647
    // Predicated region
    $region18: #{tpu_custom_call.1} parent=1 // pred_check
      _
    $region19: #{tpu_custom_call.1} parent=1 // pred_check_branch
      %655 = sbr.rel (0) target = $region21
    $region20: #{tpu_custom_call.1} parent=1 // pred_region
      _
    $region21: #{tpu_custom_call.1} parent=1 // pred_fallthru
      _
    // Predicated region
    $region22: #{tpu_custom_call.1} parent=1 // pred_check
      _
    $region23: #{tpu_custom_call.1} parent=1 // pred_check_branch
      %657 = sbr.rel (0) target = $region25
    $region24: #{tpu_custom_call.1} parent=1 // pred_region
      _
    $region25: #{tpu_custom_call.1} parent=1 // pred_fallthru
      _
    %658 = vsyncpa [#allocation3], 1
    %659 = vsyncpa [#allocation5], 1

</llo_original>
